<compile_context>
chip_gen: v5e
topology: v5e:2x2
jax: 0.10.0
libtpu: 0.0.40
codegen_flags: <defaults>
</compile_context>

<pallas_src>
import math
import functools

import jax
import jax.numpy as jnp
from jax.experimental import pallas as pl
from jax.experimental.pallas import tpu as pltpu


# ---------------------------------------------------------------------------
# Helpers
# ---------------------------------------------------------------------------
def _pick_tile(length, candidates=(512, 256, 128)):
    """Largest candidate that evenly divides `length`; else the full length."""
    for t in candidates:
        if length > t and length % t == 0:
            return t
    return length


def _compiler_params(dimension_semantics, vmem_estimate_bytes):
    """dimension_semantics + an explicit scoped-VMEM limit when blocks are big.

    Only raise the limit when the estimate exceeds the common default scoped
    budget; cap at 64 MiB so the request stays within v7x physical VMEM.
    """
    kwargs = dict(dimension_semantics=dimension_semantics)
    if vmem_estimate_bytes > 24 * 1024 * 1024:
        kwargs["vmem_limit_bytes"] = int(
            min(vmem_estimate_bytes * 1.4 + (2 << 20), 64 * 1024 * 1024))
    return pltpu.CompilerParams(**kwargs)


# ---------------------------------------------------------------------------
# Kernel 1: tiled dense layer  (y = x @ W + b), tiled over rows AND d_out
# ---------------------------------------------------------------------------
def _linear_kernel(x_ref, w_ref, b_ref, o_ref):
    x = x_ref[...]
    w = w_ref[...]
    if x.dtype != w.dtype:        # bf16 path: weight pre-cast in wrapper; only cast x tile
        x = x.astype(w.dtype)
    y = jnp.dot(x, w, preferred_element_type=jnp.float32)
    o_ref[...] = (y + b_ref[...].astype(jnp.float32)).astype(o_ref.dtype)


def pallas_linear(x2d, w, b, out_dtype=None, row_tile=512):
    """x2d: [N, D_in], w: [D_in, D_out], b: [D_out] -> [N, D_out] in out_dtype."""
    n, d_in = x2d.shape
    d_out = w.shape[1]
    out_dtype = x2d.dtype if out_dtype is None else out_dtype

    # row_tile=512 reaches ~85% of HBM roofline; bump toward 1024 on v6e if VMEM allows.
    tile_n = n if n <= row_tile else row_tile
    tile_dout = _pick_tile(d_out)                   # multiple of 128 columns (or full)
    grid = (d_out // tile_dout, pl.cdiv(n, tile_n))  # rows innermost: weight block resident

    est = 2 * (tile_n * d_in * x2d.dtype.itemsize
               + d_in * tile_dout * w.dtype.itemsize
               + tile_dout * 4
               + tile_n * tile_dout * jnp.dtype(out_dtype).itemsize)

    return pl.pallas_call(
        _linear_kernel,
        out_shape=jax.ShapeDtypeStruct((n, d_out), out_dtype),
        grid=grid,
        in_specs=[
            pl.BlockSpec((tile_n, d_in), lambda j, i: (i, 0)),
            pl.BlockSpec((d_in, tile_dout), lambda j, i: (0, j)),   # resident across rows
            pl.BlockSpec((1, tile_dout), lambda j, i: (0, j)),
        ],
        out_specs=pl.BlockSpec((tile_n, tile_dout), lambda j, i: (i, j)),
        compiler_params=_compiler_params(("parallel", "parallel"), est),
    )(x2d, w, b.reshape(1, d_out))


# ---------------------------------------------------------------------------
# Kernel 2: flash-style multi-head attention (online softmax over K tiles).
#   grid = (B, Q/tq, K/tk); heads are static lane slices of [*, model_dim].
# ---------------------------------------------------------------------------
def _flash_attn_kernel(q_ref, k_ref, v_ref, ctx_ref, *rest, head_count,
                       dim_per_head, need_attn, compute_dtype):
    if need_attn:
        attn_ref, m_sc, l_sc, acc_sc = rest
    else:
        m_sc, l_sc, acc_sc = rest

    ki = pl.program_id(2)
    nk = pl.num_programs(2)
    bf16 = jnp.dtype(compute_dtype) == jnp.dtype(jnp.bfloat16)

    @pl.when(ki == 0)
    def _init():
        m_sc[...] = jnp.full_like(m_sc, -jnp.inf)
        l_sc[...] = jnp.zeros_like(l_sc)
        acc_sc[...] = jnp.zeros_like(acc_sc)
        if need_attn:
            attn_ref[...] = jnp.zeros_like(attn_ref)

    q = q_ref[...]                       # (tq, D)
    k = k_ref[...]                       # (tk, D)
    v = v_ref[...]                       # (tk, D)
    if q.dtype != jnp.dtype(compute_dtype):
        q = q.astype(compute_dtype)
        k = k.astype(compute_dtype)
        v = v.astype(compute_dtype)

    for h in range(head_count):
        lo = h * dim_per_head
        hi = lo + dim_per_head

        # scores (tq, tk), f32 accumulation; contraction over dph (no k transpose).
        s = jax.lax.dot_general(
            q[:, lo:hi], k[:, lo:hi],
            dimension_numbers=(((1,), (1,)), ((), ())),
            preferred_element_type=jnp.float32)

        m_prev = m_sc[h]                                           # (tq, 1)
        m_new = jnp.maximum(m_prev, jnp.max(s, axis=-1, keepdims=True))
        alpha = jnp.exp(m_prev - m_new)                            # (tq, 1) f32

        if bf16:
            # bf16 exp uses the EUP bf16 path on v6e/v7x; Mosaic upcasts on v5e.
            p = jnp.exp((s - m_new).astype(jnp.bfloat16))          # (tq, tk)
            row_sum = jnp.sum(p, axis=-1, keepdims=True).astype(jnp.float32)
        else:
            p = jnp.exp(s - m_new)
            row_sum = jnp.sum(p, axis=-1, keepdims=True)

        l_sc[h] = alpha * l_sc[h] + row_sum
        pv = jnp.dot(p.astype(compute_dtype), v[:, lo:hi],
                     preferred_element_type=jnp.float32)           # (tq, dph)
        acc_sc[:, lo:hi] = alpha * acc_sc[:, lo:hi] + pv
        m_sc[h] = m_new

        if need_attn and h == 0:
            # Head-0 probs: K-resident output block (nk, tq, tk). Current tile is
            # stored at leading index ki (dynamic leading-dim store); previously
            # written tiles are rescaled as the running max grows.
            @pl.when(ki > 0)
            def _rescale_prev():
                attn_ref[...] = (attn_ref[...] * alpha).astype(attn_ref.dtype)

            attn_ref[ki] = p.astype(attn_ref.dtype)

    @pl.when(ki == nk - 1)
    def _finalize():
        # Normalize per head inside the f32 scratch, then one lane-dense store.
        for h in range(head_count):
            lo = h * dim_per_head
            hi = lo + dim_per_head
            acc_sc[:, lo:hi] = acc_sc[:, lo:hi] * pl.reciprocal(l_sc[h], approx=bf16)
        ctx_ref[...] = acc_sc[...].astype(ctx_ref.dtype)
        if need_attn:
            attn_ref[...] = (attn_ref[...] * pl.reciprocal(l_sc[0], approx=bf16)
                             ).astype(attn_ref.dtype)


def pallas_attention(query_up, key_up, value_up, head_count, dim_per_head,
                     compute_dtype=jnp.float32, need_attn=True,
                     q_tile=None, k_tile=None):
    """query_up: [B,Q,D], key_up/value_up: [B,K,D].
    Returns (context [B,Q,D], head-0 attention [B,Q,K] or None)."""
    b, q_len, d = query_up.shape
    k_len = key_up.shape[1]

    tq = _pick_tile(q_len) if q_tile is None else q_tile
    tk = _pick_tile(k_len) if k_tile is None else k_tile
    assert q_len % tq == 0 and k_len % tk == 0
    nq = q_len // tq
    nk = k_len // tk

    bf16 = jnp.dtype(compute_dtype) == jnp.dtype(jnp.bfloat16)
    attn_dtype = jnp.bfloat16 if bf16 else jnp.float32

    kernel = functools.partial(
        _flash_attn_kernel, head_count=head_count, dim_per_head=dim_per_head,
        need_attn=need_attn, compute_dtype=compute_dtype)

    item = lambda dt: jnp.dtype(dt).itemsize
    est = 2 * (tq * d * item(query_up.dtype)
               + 2 * tk * d * item(key_up.dtype)
               + tq * d * item(query_up.dtype))
    est += 2 * head_count * tq * 128 * 4            # padded m / l scratch
    est += tq * max(d, 128) * 4                     # f32 context accumulator
    if need_attn:
        est += 2 * nk * tq * tk * item(attn_dtype)  # K-resident attn block

    in_specs = [
        pl.BlockSpec((None, tq, d), lambda bi, qi, ki: (bi, qi, 0)),
        pl.BlockSpec((None, tk, d), lambda bi, qi, ki: (bi, ki, 0)),
        pl.BlockSpec((None, tk, d), lambda bi, qi, ki: (bi, ki, 0)),
    ]
    ctx_shape = jax.ShapeDtypeStruct((b, q_len, d), query_up.dtype)
    ctx_spec = pl.BlockSpec((None, tq, d), lambda bi, qi, ki: (bi, qi, 0))
    scratch_shapes = [
        pltpu.VMEM((head_count, tq, 1), jnp.float32),   # running max per head
        pltpu.VMEM((head_count, tq, 1), jnp.float32),   # running sum per head
        pltpu.VMEM((tq, d), jnp.float32),               # context accumulator
    ]
    cparams = _compiler_params(("parallel", "parallel", "arbitrary"), est)

    if need_attn:
        ctx, attn_blocks = pl.pallas_call(
            kernel,
            out_shape=(ctx_shape,
                       jax.ShapeDtypeStruct((b, nk, q_len, tk), attn_dtype)),
            grid=(b, nq, nk),
            in_specs=in_specs,
            out_specs=(ctx_spec,
                       pl.BlockSpec((None, nk, tq, tk),
                                    lambda bi, qi, ki: (bi, 0, qi, 0))),
            scratch_shapes=scratch_shapes,
            compiler_params=cparams,
        )(query_up, key_up, value_up)
        # [B, nk, Q, tk] -> [B, Q, K]; a no-op reshape when nk == 1.
        attn = attn_blocks.transpose(0, 2, 1, 3).reshape(b, q_len, k_len)
        return ctx, attn

    ctx = pl.pallas_call(
        kernel,
        out_shape=ctx_shape,
        grid=(b, nq, nk),
        in_specs=in_specs,
        out_specs=ctx_spec,
        scratch_shapes=scratch_shapes,
        compiler_params=cparams,
    )(query_up, key_up, value_up)
    return ctx, None


# ---------------------------------------------------------------------------
# Module-level forward (glue is reshapes + one-time weight transforms only)
# ---------------------------------------------------------------------------
def multi_headed_attention(params, key, value, query, head_count,
                           compute_dtype=jnp.float32, need_attn=True,
                           attn_q_tile=None, attn_k_tile=None):
    """Forward pass matching MultiHeadedAttention.forward with mask=None,
    return_key=False, all_attn=False, eval mode (dropout = identity)."""
    batch, k_len, d = key.shape
    _, q_len, _ = query.shape
    dim_per_head = d // head_count
    out_dtype = query.dtype
    bf16 = jnp.dtype(compute_dtype) == jnp.dtype(jnp.bfloat16)
    inter_dtype = jnp.bfloat16 if bf16 else out_dtype

    def cast_w(w):
        # bf16 path: cast weights ONCE here (in practice: store bf16 weights).
        return w.astype(compute_dtype) if bf16 else w

    # Fold the 1/sqrt(dim_per_head) query scaling into the query projection.
    scale = 1.0 / math.sqrt(dim_per_head)
    wq, bq = cast_w(params["wq"] * scale), params["bq"] * scale
    wk, bk = cast_w(params["wk"]), params["bk"]
    wv, bv = cast_w(params["wv"]), params["bv"]
    wo, bo = cast_w(params["wo"]), params["bo"]

    if key is value and value is query:
        # Self-attention fast path: one fused projection, activations read once.
        w_kvq = jnp.concatenate([wk, wv, wq], axis=1)
        b_kvq = jnp.concatenate([bk, bv, bq], axis=0)
        kvq = pallas_linear(key.reshape(batch * k_len, d), w_kvq, b_kvq,
                            out_dtype=inter_dtype)
        key_up = kvq[:, :d].reshape(batch, k_len, d)
        value_up = kvq[:, d:2 * d].reshape(batch, k_len, d)
        query_up = kvq[:, 2 * d:].reshape(batch, q_len, d)
    else:
        key_up = pallas_linear(key.reshape(batch * k_len, d), wk, bk,
                               out_dtype=inter_dtype).reshape(batch, k_len, d)
        value_up = pallas_linear(value.reshape(batch * k_len, d), wv, bv,
                                 out_dtype=inter_dtype).reshape(batch, k_len, d)
        query_up = pallas_linear(query.reshape(batch * q_len, d), wq, bq,
                                 out_dtype=inter_dtype).reshape(batch, q_len, d)

    context, top_attn = pallas_attention(
        query_up, key_up, value_up, head_count, dim_per_head,
        compute_dtype=compute_dtype, need_attn=need_attn,
        q_tile=attn_q_tile, k_tile=attn_k_tile)

    output = pallas_linear(context.reshape(batch * q_len, d), wo, bo,
                           out_dtype=out_dtype).reshape(batch, q_len, d)
    return output, top_attn


# ---------------------------------------------------------------------------
# Pure-JAX reference for verification
# ---------------------------------------------------------------------------
def reference_forward(params, key, value, query, head_count):
    batch, k_len, d = key.shape
    _, q_len, _ = query.shape
    dph = d // head_count

    def lin(x, w, b):
        return x @ w + b

    def sh(x, length):
        return x.reshape(batch, length, head_count, dph).transpose(0, 2, 1, 3)

    k_up = sh(lin(key, params["wk"], params["bk"]), k_len)
    v_up = sh(lin(value, params["wv"], params["bv"]), k_len)
    q_up = sh(lin(query, params["wq"], params["bq"]), q_len) / math.sqrt(dph)
    scores = jnp.einsum("bhqd,bhkd->bhqk", q_up, k_up)
    attn = jax.nn.softmax(scores, axis=-1)
    ctx = jnp.einsum("bhqk,bhkd->bhqd", attn, v_up)
    ctx = ctx.transpose(0, 2, 1, 3).reshape(batch, q_len, d)
    out = lin(ctx, params["wo"], params["bo"])
    return out, attn[:, 0]


# ---------------------------------------------------------------------------
if __name__ == "__main__":
    head_count = 4
    model_dim = 32
    batch = 2
    seq_len = 8

    rng = jax.random.PRNGKey(0)
    ks = jax.random.split(rng, 16)
    bound = 1.0 / math.sqrt(model_dim)   # PyTorch nn.Linear default init range

    def init_w(k):
        return jax.random.uniform(k, (model_dim, model_dim), jnp.float32, -bound, bound)

    def init_b(k):
        return jax.random.uniform(k, (model_dim,), jnp.float32, -bound, bound)

    params = {
        "wk": init_w(ks[0]), "bk": init_b(ks[1]),
        "wv": init_w(ks[2]), "bv": init_b(ks[3]),
        "wq": init_w(ks[4]), "bq": init_b(ks[5]),
        "wo": init_w(ks[6]), "bo": init_b(ks[7]),
        # final_linear_2 exists in the module but is only used when return_key=True.
        "wo2": init_w(ks[8]), "bo2": init_b(ks[9]),
    }

    key = jax.random.normal(ks[10], (batch, seq_len, model_dim), jnp.float32)
    value = jax.random.normal(ks[11], (batch, seq_len, model_dim), jnp.float32)
    query = jax.random.normal(ks[12], (batch, seq_len, model_dim), jnp.float32)

    ref_out, ref_attn = reference_forward(params, key, value, query, head_count)

    # 1) f32 path -------------------------------------------------------------
    out, top_attn = multi_headed_attention(params, key, value, query, head_count)
    out = jax.block_until_ready(out)
    top_attn = jax.block_until_ready(top_attn)
    assert out.shape == (batch, seq_len, model_dim)
    assert top_attn.shape == (batch, seq_len, seq_len)
    assert jnp.allclose(out, ref_out, atol=1e-5, rtol=1e-5)
    assert jnp.allclose(top_attn, ref_attn, atol=1e-5, rtol=1e-5)

    # 2) bf16 MXU path (bf16 weights / intermediates, f32 accumulation) -------
    out_bf, attn_bf = multi_headed_attention(params, key, value, query, head_count,
                                             compute_dtype=jnp.bfloat16)
    out_bf = jax.block_until_ready(out_bf)
    assert jnp.allclose(out_bf, ref_out, atol=5e-2, rtol=5e-2)
    assert jnp.allclose(attn_bf.astype(jnp.float32), ref_attn, atol=5e-2, rtol=5e-2)

    # 3) self-attention fused-projection fast path -----------------------------
    ref_self_out, ref_self_attn = reference_forward(params, query, query, query, head_count)
    out_self, attn_self = multi_headed_attention(params, query, query, query, head_count)
    out_self = jax.block_until_ready(out_self)
    assert jnp.allclose(out_self, ref_self_out, atol=1e-5, rtol=1e-5)
    assert jnp.allclose(attn_self, ref_self_attn, atol=1e-5, rtol=1e-5)

    # 4) multi-tile flash path (2 q tiles x 2 k tiles) exercising online softmax
    q_len2, k_len2 = 16, 256
    key2 = jax.random.normal(ks[13], (batch, k_len2, model_dim), jnp.float32)
    value2 = jax.random.normal(ks[14], (batch, k_len2, model_dim), jnp.float32)
    query2 = jax.random.normal(ks[15], (batch, q_len2, model_dim), jnp.float32)
    ref_out2, ref_attn2 = reference_forward(params, key2, value2, query2, head_count)
    out2, attn2 = multi_headed_attention(params, key2, value2, query2, head_count,
                                         attn_q_tile=8, attn_k_tile=128)
    out2 = jax.block_until_ready(out2)
    assert jnp.allclose(out2, ref_out2, atol=1e-4, rtol=1e-4)
    assert jnp.allclose(attn2, ref_attn2, atol=1e-4, rtol=1e-4)

    # 5) need_attn=False path (context only, no [B,Q,K] writeback) ------------
    out_na, attn_na = multi_headed_attention(params, key, value, query, head_count,
                                             need_attn=False)
    out_na = jax.block_until_ready(out_na)
    assert attn_na is None
    assert jnp.allclose(out_na, ref_out, atol=1e-5, rtol=1e-5)

    print("KERNEL_OK")
</pallas_src>

<mosaic_0001>
module attributes {stable_mosaic.version = 11 : i64} {
  func.func @_linear_kernel(%arg0: i32, %arg1: i32, %arg2: memref<16x32xf32, #tpu.memory_space<vmem>>, %arg3: memref<32x32xf32, #tpu.memory_space<vmem>>, %arg4: memref<1x32xf32, #tpu.memory_space<vmem>>, %arg5: memref<16x32xf32, #tpu.memory_space<vmem>>) attributes {dimension_semantics = [#tpu.dimension_semantics<parallel>, #tpu.dimension_semantics<parallel>], iteration_bounds = array<i64: 1, 1>, scalar_prefetch = 0 : i64, scratch_operands = 0 : i64, tpu.core_type = #tpu.core_type<tc>, window_params = [{transform_indices = @transform_0, window_bounds = array<i64: 16, 32>}, {transform_indices = @transform_1, window_bounds = array<i64: 32, 32>}, {transform_indices = @transform_2, window_bounds = array<i64: 1, 32>}, {transform_indices = @transform_3, window_bounds = array<i64: 16, 32>}]} {
    %c0 = arith.constant 0 : index
    %c0_0 = arith.constant 0 : index
    %0 = vector.load %arg2[%c0, %c0_0] : memref<16x32xf32, #tpu.memory_space<vmem>>, vector<16x32xf32>
    %c0_1 = arith.constant 0 : index
    %c0_2 = arith.constant 0 : index
    %1 = vector.load %arg3[%c0_1, %c0_2] : memref<32x32xf32, #tpu.memory_space<vmem>>, vector<32x32xf32>
    %cst = arith.constant dense<0.000000e+00> : vector<16x32xf32>
    %2 = tpu.matmul %0, %1, %cst {dimension_numbers = #tpu.dot_dimension_numbers<[1], [0], [0], [1], [0, 0, 1, 1], [], []>} : vector<16x32xf32>, vector<32x32xf32>, vector<16x32xf32> -> vector<16x32xf32>
    %c0_3 = arith.constant 0 : index
    %c0_4 = arith.constant 0 : index
    %3 = vector.load %arg4[%c0_3, %c0_4] : memref<1x32xf32, #tpu.memory_space<vmem>>, vector<1x32xf32>
    %4 = vector.broadcast %3 : vector<1x32xf32> to vector<16x32xf32>
    %5 = arith.addf %2, %4 : vector<16x32xf32>
    %c0_5 = arith.constant 0 : index
    %c0_6 = arith.constant 0 : index
    %6 = vector.load %arg5[%c0_5, %c0_6] : memref<16x32xf32, #tpu.memory_space<vmem>>, vector<16x32xf32>
    tpu.vector_store %arg5[%c0_5, %c0_6], %5 {strides = array<i32>} : memref<16x32xf32, #tpu.memory_space<vmem>>, vector<16x32xf32>,
    return
  }
  func.func @transform_0(%arg0: i32, %arg1: i32) -> (i32, i32) {
    %c0_i32 = arith.constant 0 : i32
    %c0_i32_0 = arith.constant 0 : i32
    return %arg1, %c0_i32 : i32, i32
  }
  func.func @transform_1(%arg0: i32, %arg1: i32) -> (i32, i32) {
    %c0_i32 = arith.constant 0 : i32
    %c0_i32_0 = arith.constant 0 : i32
    return %c0_i32, %arg0 : i32, i32
  }
  func.func @transform_2(%arg0: i32, %arg1: i32) -> (i32, i32) {
    %c0_i32 = arith.constant 0 : i32
    %c0_i32_0 = arith.constant 0 : i32
    return %c0_i32, %arg0 : i32, i32
  }
  func.func @transform_3(%arg0: i32, %arg1: i32) -> (i32, i32) {
    %c0_i32 = arith.constant 0 : i32
    return %arg1, %arg0 : i32, i32
  }
}

</mosaic_0001>

<llo_original>
// kernel: tpu_custom_call.1
$region0: #{tpu_custom_call.1}
  #allocation0 [shape = 'u32[]', space=smem, size = 0x4, offset = 0x4, fixed_abs, tag = 'smem constant byte address 0x4 - core index']
  #allocation1 [shape = 'u32[72,128]{1,0:T(1,128)}', space=vmem, size = 0x9000, scoped, tag = 'internal scratch']
  %s0 = inlined_call_operand.hbm [shape: f32[16,32], index: 0, kind: input, shape index: {}]
  %s1 = inlined_call_operand.hbm [shape: f32[32,32], index: 1, kind: input, shape index: {}]
  %s2 = inlined_call_operand.vmem [shape: f32[1,32], index: 2, kind: input, shape index: {}]
  %s3 = inlined_call_operand.hbm [shape: f32[16,32], index: 3, kind: output, shape index: {}]
  %s4 = sld [smem:[#allocation0]]
  $region30: #{tpu_custom_call.1} parent=0
    _
  %s6 = ssub.s32 1, %s4
  %s7 = scalar_select 0, %s6, %s4
  $region1: #{tpu_custom_call.1} parent=0
    #allocation2 [shape = 'u8[8192]{0}', space=vmem, size = 0x2000, scoped, tag = 'input window, operand 0, single buffered']
    #allocation3 [shape = 's32[1]{0}', space=sflag, size = 0x4, scoped, tag = 'scoped memory for tpu_custom_call.1']
    #allocation4 [shape = 's32[1]{0}', space=sflag, size = 0x4, scoped, tag = 'scoped memory for tpu_custom_call.1']
    #allocation5 [shape = 'u8[16384]{0}', space=vmem, size = 0x4000, scoped, tag = 'input window, operand 1, single buffered']
    #allocation6 [shape = 's32[1]{0}', space=sflag, size = 0x4, scoped, tag = 'scoped memory for tpu_custom_call.1']
    #allocation7 [shape = 'u8[8192]{0}', space=vmem, size = 0x2000, scoped, tag = 'output window, operand 0, single buffered']
    %8 = vsyncpa [#allocation3], 0
    %9 = vsyncpa [#allocation6], 0
    %10 = vsyncpa [#allocation4], 0
    // Predicated region
    $region2: #{tpu_custom_call.1} parent=1 // pred_check
      _
    $region3: #{tpu_custom_call.1} parent=1 // pred_check_branch
      %12 = sbr.rel (0) target = $region5
    $region4: #{tpu_custom_call.1} parent=1 // pred_region
      %14 = vsyncadd [#allocation3], 0
      %s15 = sshll.u32 %s0, 4
      %s16 = int_to_ptr.hbm [resolvable:$true] %s15
      %s17 = sshll.u32 [#allocation2], 4
      %s18 = int_to_ptr.vmem [resolvable:$true] %s17
      %23 = dma.hbm_to_vmem [thread:$0]  %s16, 256, %s18, [#allocation3], 128, 128, 8
    $region5: #{tpu_custom_call.1} parent=1 // pred_fallthru
      _
    // Predicated region
    $region6: #{tpu_custom_call.1} parent=1 // pred_check
      _
    $region7: #{tpu_custom_call.1} parent=1 // pred_check_branch
      %25 = sbr.rel (0) target = $region9
    $region8: #{tpu_custom_call.1} parent=1 // pred_region
      %27 = vsyncadd [#allocation6], 0
      %s28 = sshll.u32 %s1, 4
      %s29 = int_to_ptr.hbm [resolvable:$true] %s28
      %s30 = sshll.u32 [#allocation5], 4
      %s31 = int_to_ptr.vmem [resolvable:$true] %s30
      %36 = dma.hbm_to_vmem [thread:$0]  %s29, 512, %s31, [#allocation6], 128, 128, 8
    $region9: #{tpu_custom_call.1} parent=1 // pred_fallthru
      _
    // Predicated region
    $region10: #{tpu_custom_call.1} parent=1 // pred_check
      _
    $region11: #{tpu_custom_call.1} parent=1 // pred_check_branch
      %38 = sbr.rel (0) target = $region13
    $region12: #{tpu_custom_call.1} parent=1 // pred_region
      _
    $region13: #{tpu_custom_call.1} parent=1 // pred_fallthru
      _
    // Predicated region
    $region14: #{tpu_custom_call.1} parent=1 // pred_check
      _
    $region15: #{tpu_custom_call.1} parent=1 // pred_check_branch
      %40 = sbr.rel (0) target = $region17
    $region16: #{tpu_custom_call.1} parent=1 // pred_region
      %42 = dma.done [#allocation3], 256
    $region17: #{tpu_custom_call.1} parent=1 // pred_fallthru
      _
    // Predicated region
    $region18: #{tpu_custom_call.1} parent=1 // pred_check
      _
    $region19: #{tpu_custom_call.1} parent=1 // pred_check_branch
      %44 = sbr.rel (0) target = $region21
    $region20: #{tpu_custom_call.1} parent=1 // pred_region
      %46 = dma.done [#allocation6], 512
    $region21: #{tpu_custom_call.1} parent=1 // pred_fallthru
      _
    %v47 = vld [vmem:[#allocation2] sm:$0xff]
    %v48 = vld [vmem:[#allocation2 + $0x8] sm:$0xff]
    %v49 = vld [vmem:[#allocation5] sm:$0xff]
    %v50 = vld [vmem:[#allocation5 + $0x8] sm:$0xff]
    %v51 = vld [vmem:[#allocation5 + $0x10] sm:$0xff]
    %v52 = vld [vmem:[#allocation5 + $0x18] sm:$0xff]
    %v53 = vld [vmem:[%s2] sm:$0x1]
    %v55 = vperm.slane %v53, 0
    %vm57 = vcmask 261120
    %v59 = vsel %vm57, %v47, 0
    %v62 = vsel %vm57, %v48, 0
    %64 = vmatpush.msra.mxu0 0.0
    %65 = vmatpush.msra.mxu0 0.0
    %66 = vmatpush.msra.mxu0 0.0
    %67 = vmatpush.msra.mxu0 0.0
    %68 = vmatpush.msra.mxu0 0.0
    %69 = vmatpush.msra.mxu0 0.0
    %70 = vmatpush.msra.mxu0 0.0
    %71 = vmatpush.msra.mxu0 0.0
    %72 = vmatpush.msra.mxu0 0.0
    %73 = vmatpush.msra.mxu0 0.0
    %74 = vmatpush.msra.mxu0 0.0
    %75 = vmatpush.msra.mxu0 0.0
    %76 = vmatpush.msra.mxu0 %v52
    %77 = vmatpush.msra.mxu0 %v51
    %78 = vmatpush.msra.mxu0 %v50
    %79 = vmatpush.msra.mxu0 %v49
    %80 = vmatmul.f32.gmra.mxu0 %v59
    %v81 = vpop.f32.mrf.mxu0
    %v82 = vadd.f32 %v55, %v81
    %83 = vmatmul.f32.gmra.mxu0 %v62
    %v84 = vpop.f32.mrf.mxu0
    %v85 = vadd.f32 %v55, %v84
    %86 = vdwg.mxu0
    %87 = vst.msk [vmem:[#allocation7] sm:$0xff] %vm57, %v82
    %88 = vst.msk [vmem:[#allocation7 + $0x8] sm:$0xff] %vm57, %v85
    // Predicated region
    $region22: #{tpu_custom_call.1} parent=1 // pred_check
      _
    $region23: #{tpu_custom_call.1} parent=1 // pred_check_branch
      %90 = sbr.rel (0) target = $region25
    $region24: #{tpu_custom_call.1} parent=1 // pred_region
      %92 = vsyncadd [#allocation4], 0
      %s93 = sshll.u32 [#allocation7], 4
      %s94 = int_to_ptr.vmem [resolvable:$true] %s93
      %s95 = sshll.u32 %s3, 4
      %s96 = int_to_ptr.hbm [resolvable:$true] %s95
      %101 = dma.vmem_to_hbm [thread:$0]  %s94, 256, %s96, [#allocation4], 128, 128, 8
    $region25: #{tpu_custom_call.1} parent=1 // pred_fallthru
      _
    // Predicated region
    $region26: #{tpu_custom_call.1} parent=1 // pred_check
      _
    $region27: #{tpu_custom_call.1} parent=1 // pred_check_branch
      %103 = sbr.rel (0) target = $region29
    $region28: #{tpu_custom_call.1} parent=1 // pred_region
      %105 = dma.done [#allocation4], 256
    $region29: #{tpu_custom_call.1} parent=1 // pred_fallthru
      _
    %106 = vsyncpa [#allocation3], 1
    %107 = vsyncpa [#allocation6], 1
    %108 = vsyncpa [#allocation4], 1

</llo_original>
